<compile_context>
chip_gen: v7x
topology: tpu7x:2x2x1
jax: 0.10.0
libtpu: 0.0.40
codegen_flags: <defaults>
</compile_context>

<pallas_src>
import jax
import jax.numpy as jnp
from jax.experimental import pallas as pl
from jax.experimental.pallas import tpu as pltpu

LN_EPS = 1e-6
MASK_FILL = -1e9
GLIMPSES = 1  # kernel specializes to a single glimpse


def attflat_kernel(x_ref, mask_ref, wpk_ref, vecs_ref, out_ref):
    # x_ref:    (bt, S, C) f32   batch tile of inputs
    # mask_ref: (bt, S, 1) i32   nonzero where the position is padded
    # wpk_ref:  (C, 2C)    f32   packed weights [w1 (MLP FC) | wm (linear_merge)]
    # vecs_ref: (6, C)     f32   rows: [b1, bm, gamma, beta, w2[:,0], b2 (padded)]
    # out_ref:  (bt, C)    f32
    bt, S, C = x_ref.shape                      # derived from refs, not globals

    x = x_ref[...]                              # (bt, S, C)
    x2d = x.reshape(bt * S, C)

    b1 = vecs_ref[0:1, :]
    bm = vecs_ref[1:2, :]
    gamma = vecs_ref[2:3, :]
    beta = vecs_ref[3:4, :]
    w2row = vecs_ref[4:5, :]                    # (1, C) == w2[:, 0]
    b2 = vecs_ref[5:6, 0:1]                     # (1, 1)

    # --- single fused MXU push: [h_pre | xm] = x2d @ [w1 | wm] ---
    hw = jnp.dot(x2d, wpk_ref[...], preferred_element_type=jnp.float32)
    h = jnp.maximum(hw[:, :C] + b1, 0.0)        # MLP hidden, (bt*S, C)
    xm = hw[:, C:].reshape(bt, S, C)            # per-token linear_merge projection

    # --- glimpse scores (G == 1): VPU lane-reduce instead of a 2nd matmul ---
    att = jnp.sum(h * w2row, axis=-1, keepdims=True) + b2      # (bt*S, 1)
    att = att.reshape(bt, S, 1)

    # --- masked softmax over the sequence axis (exact divide) ---
    m = mask_ref[...]                           # (bt, S, 1) int32
    att = jnp.where(m != 0, MASK_FILL, att)
    att = att - jnp.max(att, axis=1, keepdims=True)
    p = jnp.exp(att)
    p = p / jnp.sum(p, axis=1, keepdims=True)

    # --- linear_merge folded in via distributivity ---
    # sum_s p_s * (x_s @ wm) == (sum_s p_s * x_s) @ wm
    merged = jnp.sum(p * xm, axis=1) + bm       # (bt, C)

    # --- openvqa LayerNorm: gamma * (x - mean) / (std_unbiased + eps) + beta ---
    mean = jnp.mean(merged, axis=-1, keepdims=True)
    diff = merged - mean
    var_unbiased = jnp.sum(diff * diff, axis=-1, keepdims=True) / (C - 1)
    std = jnp.sqrt(var_unbiased)
    out_ref[...] = gamma * diff / (std + LN_EPS) + beta        # lane-dense (bt, C) store


def pack_params(params):
    """Pack parameters ONCE at init time (hoisted off the per-call path)."""
    w1, b1, w2, b2, wm, bm, gamma, beta = params
    C = w1.shape[0]
    G = w2.shape[1]
    assert G == GLIMPSES == 1, "packing/kernel specialize to a single glimpse"
    w_packed = jnp.concatenate([w1, wm], axis=1)                       # (C, 2C)
    b2_row = jnp.zeros((1, C), jnp.float32).at[:, :G].set(b2)          # b2 padded to C lanes
    vecs = jnp.concatenate([b1, bm, gamma, beta, w2.T, b2_row], 0)     # (6, C)
    return w_packed, vecs


@jax.jit
def attflat(x, x_mask_bool, w_packed, vecs):
    """x: (B, S, C) f32; x_mask_bool: (B, 1, 1, S) bool (True = padded)."""
    B, S, C = x.shape
    # Batch tile: multiple of 8 (sublane tile) when possible so the (bt, C)
    # output block stays (8,128)-friendly; otherwise the whole (small) batch.
    bt = 8 if B % 8 == 0 else B
    nb = B // bt

    # TODO(synk): one tiny wrapper fusion; an integer-mask producer removes it.
    mask = x_mask_bool.reshape(B, S, 1).astype(jnp.int32)

    flops = 2 * B * S * C * (2 * C) + 4 * B * S * C
    bytes_accessed = 4 * (B * S * C + B * S + 2 * C * C + 6 * C + B * C)

    return pl.pallas_call(
        attflat_kernel,
        out_shape=jax.ShapeDtypeStruct((B, C), jnp.float32),
        grid=(nb,),
        in_specs=[
            pl.BlockSpec((bt, S, C), lambda i: (i, 0, 0)),
            pl.BlockSpec((bt, S, 1), lambda i: (i, 0, 0)),
            pl.BlockSpec((C, 2 * C), lambda i: (0, 0)),   # weights resident across steps
            pl.BlockSpec((6, C), lambda i: (0, 0)),
        ],
        out_specs=pl.BlockSpec((bt, C), lambda i: (i, 0)),
        compiler_params=pltpu.CompilerParams(
            dimension_semantics=("parallel",)),           # v7x: shard batch tiles across TCs
        cost_estimate=pl.CostEstimate(
            flops=flops, transcendentals=B * S, bytes_accessed=bytes_accessed),
    )(x, mask, w_packed, vecs)


def attflat_ref(x, x_mask_bool, params):
    """Pure-JAX reference mirroring the PyTorch module (eval mode)."""
    w1, b1, w2, b2, wm, bm, gamma, beta = params
    B, S, C = x.shape
    G = w2.shape[1]
    h = jnp.maximum(x.reshape(B * S, C) @ w1 + b1, 0.0)
    att = (h @ w2 + b2).reshape(B, S, G)
    m = x_mask_bool.reshape(B, S, 1)
    att = jnp.where(m, MASK_FILL, att)
    att = jax.nn.softmax(att, axis=1)
    att_list = [jnp.sum(att[:, :, g:g + 1] * x, axis=1) for g in range(G)]
    xa = jnp.concatenate(att_list, axis=1)                 # (B, G*C)
    merged = xa @ wm + bm
    mean = merged.mean(-1, keepdims=True)
    diff = merged - mean
    std = jnp.sqrt(jnp.sum(diff * diff, -1, keepdims=True) / (C - 1))
    return gamma * diff / (std + LN_EPS) + beta


def _bf16_exact(a):
    # Round test data to bf16-representable f32 values: the MXU multiplies in
    # bf16 natively, so this makes the kernel/reference comparison independent
    # of either side's f32-matmul pass strategy.  Kernel accepts any f32.
    return a.astype(jnp.bfloat16).astype(jnp.float32)


def make_params(key, C, G=1):
    ks = jax.random.split(key, 4)
    w1 = _bf16_exact(jax.random.normal(ks[0], (C, C), jnp.float32) * 0.1)
    b1 = jnp.zeros((1, C), jnp.float32)
    w2 = _bf16_exact(jax.random.normal(ks[1], (C, G), jnp.float32) * 0.1)
    b2 = jnp.zeros((1, G), jnp.float32)
    wm = _bf16_exact(jax.random.normal(ks[2], (G * C, C), jnp.float32) * 0.1)
    bm = _bf16_exact(jax.random.normal(ks[3], (1, C), jnp.float32) * 0.01)
    gamma = jnp.ones((1, C), jnp.float32)
    beta = jnp.zeros((1, C), jnp.float32)
    return (w1, b1, w2, b2, wm, bm, gamma, beta)


if __name__ == "__main__":
    B, S, C = 16, 8, 32          # B=16 exercises the 2-step parallel batch grid
    key = jax.random.PRNGKey(0)
    kx, kp = jax.random.split(key)

    x = _bf16_exact(jax.random.normal(kx, (B, S, C), jnp.float32))
    # PyTorch-style padding mask (B, 1, 1, S): True = padded position.
    x_mask = jnp.zeros((B, 1, 1, S), dtype=bool)
    x_mask = x_mask.at[1::2, 0, 0, -2:].set(True)   # odd rows: last 2 padded
    x_mask = x_mask.at[3::4, 0, 0, -4:].set(True)   # every 4th row: last 4 padded

    params = make_params(kp, C, GLIMPSES)
    w_packed, vecs = pack_params(params)            # done ONCE at init time

    out = jax.block_until_ready(attflat(x, x_mask, w_packed, vecs))
    ref = attflat_ref(x, x_mask, params)

    assert out.shape == (B, C)
    max_err = float(jnp.max(jnp.abs(out - ref)))
    # Exact divides + bf16-representable test data => expected error ~1e-6;
    # 1e-4 leaves a wide margin while catching any semantic bug.
    assert jnp.allclose(out, ref, atol=1e-4, rtol=1e-4), max_err
    print("KERNEL_OK")
</pallas_src>

<mosaic_0001>
module attributes {stable_mosaic.version = 11 : i64} {
  func.func @attflat_kernel(%arg0: i32, %arg1: memref<8x8x32xf32, #tpu.memory_space<vmem>>, %arg2: memref<8x8x1xi32, #tpu.memory_space<vmem>>, %arg3: memref<32x64xf32, #tpu.memory_space<vmem>>, %arg4: memref<6x32xf32, #tpu.memory_space<vmem>>, %arg5: memref<8x32xf32, #tpu.memory_space<vmem>>) attributes {dimension_semantics = [#tpu.dimension_semantics<parallel>], iteration_bounds = array<i64: 2>, scalar_prefetch = 0 : i64, scratch_operands = 0 : i64, tpu.core_type = #tpu.core_type<tc>, window_params = [{transform_indices = @transform_0, window_bounds = array<i64: 8, 8, 32>}, {transform_indices = @transform_1, window_bounds = array<i64: 8, 8, 1>}, {pipeline_mode = #tpu.pipeline_mode<synchronous>, transform_indices = @transform_2, window_bounds = array<i64: 32, 64>}, {pipeline_mode = #tpu.pipeline_mode<synchronous>, transform_indices = @transform_3, window_bounds = array<i64: 6, 32>}, {transform_indices = @transform_4, window_bounds = array<i64: 8, 32>}]} {
    %c0 = arith.constant 0 : index
    %c0_0 = arith.constant 0 : index
    %c0_1 = arith.constant 0 : index
    %0 = vector.load %arg1[%c0, %c0_0, %c0_1] : memref<8x8x32xf32, #tpu.memory_space<vmem>>, vector<8x8x32xf32>
    %1 = vector.shape_cast %0 : vector<8x8x32xf32> to vector<64x32xf32>
    %c0_2 = arith.constant 0 : index
    %c0_3 = arith.constant 0 : index
    %2 = vector.load %arg4[%c0_2, %c0_3] : memref<6x32xf32, #tpu.memory_space<vmem>>, vector<1x32xf32>
    %c1 = arith.constant 1 : index
    %c0_4 = arith.constant 0 : index
    %3 = vector.load %arg4[%c1, %c0_4] : memref<6x32xf32, #tpu.memory_space<vmem>>, vector<1x32xf32>
    %c2 = arith.constant 2 : index
    %c0_5 = arith.constant 0 : index
    %4 = vector.load %arg4[%c2, %c0_5] : memref<6x32xf32, #tpu.memory_space<vmem>>, vector<1x32xf32>
    %c3 = arith.constant 3 : index
    %c0_6 = arith.constant 0 : index
    %5 = vector.load %arg4[%c3, %c0_6] : memref<6x32xf32, #tpu.memory_space<vmem>>, vector<1x32xf32>
    %c4 = arith.constant 4 : index
    %c0_7 = arith.constant 0 : index
    %6 = vector.load %arg4[%c4, %c0_7] : memref<6x32xf32, #tpu.memory_space<vmem>>, vector<1x32xf32>
    %c5 = arith.constant 5 : index
    %c0_8 = arith.constant 0 : index
    %7 = vector.load %arg4[%c5, %c0_8] : memref<6x32xf32, #tpu.memory_space<vmem>>, vector<1x1xf32>
    %c0_9 = arith.constant 0 : index
    %c0_10 = arith.constant 0 : index
    %8 = vector.load %arg3[%c0_9, %c0_10] : memref<32x64xf32, #tpu.memory_space<vmem>>, vector<32x64xf32>
    %cst = arith.constant dense<0.000000e+00> : vector<64x64xf32>
    %9 = tpu.matmul %1, %8, %cst {dimension_numbers = #tpu.dot_dimension_numbers<[1], [0], [0], [1], [0, 0, 1, 1], [], []>} : vector<64x32xf32>, vector<32x64xf32>, vector<64x64xf32> -> vector<64x64xf32>
    %10 = vector.extract_strided_slice %9 {offsets = [0, 0], sizes = [64, 32], strides = [1, 1]} : vector<64x64xf32> to vector<64x32xf32>
    %11 = vector.broadcast %2 : vector<1x32xf32> to vector<64x32xf32>
    %12 = arith.addf %10, %11 : vector<64x32xf32>
    %cst_11 = arith.constant 0.000000e+00 : f32
    %13 = vector.broadcast %cst_11 : f32 to vector<64x32xf32>
    %14 = arith.maximumf %12, %13 : vector<64x32xf32>
    %15 = vector.extract_strided_slice %9 {offsets = [0, 32], sizes = [64, 32], strides = [1, 1]} : vector<64x64xf32> to vector<64x32xf32>
    %16 = vector.shape_cast %15 : vector<64x32xf32> to vector<8x8x32xf32>
    %17 = vector.broadcast %6 : vector<1x32xf32> to vector<64x32xf32>
    %18 = arith.mulf %14, %17 : vector<64x32xf32>
    %cst_12 = arith.constant dense<0.000000e+00> : vector<64xf32>
    %19 = vector.multi_reduction <add>, %18, %cst_12 [1] : vector<64x32xf32> to vector<64xf32>
    %20 = vector.shape_cast %19 : vector<64xf32> to vector<64x1xf32>
    %21 = vector.broadcast %7 : vector<1x1xf32> to vector<64x1xf32>
    %22 = arith.addf %20, %21 : vector<64x1xf32>
    %23 = vector.shape_cast %22 : vector<64x1xf32> to vector<8x8x1xf32>
    %c0_13 = arith.constant 0 : index
    %c0_14 = arith.constant 0 : index
    %c0_15 = arith.constant 0 : index
    %24 = vector.load %arg2[%c0_13, %c0_14, %c0_15] : memref<8x8x1xi32, #tpu.memory_space<vmem>>, vector<8x8x1xi32>
    %c0_i32 = arith.constant 0 : i32
    %25 = vector.broadcast %c0_i32 : i32 to vector<8x8x1xi32>
    %26 = arith.cmpi ne, %24, %25 : vector<8x8x1xi32>
    %cst_16 = arith.constant -1.000000e+09 : f32
    %27 = vector.broadcast %cst_16 : f32 to vector<8x8x1xf32>
    %28 = arith.select %26, %27, %23 : vector<8x8x1xi1>, vector<8x8x1xf32>
    %cst_17 = arith.constant dense<0xFF800000> : vector<8x1xf32>
    %29 = vector.multi_reduction <maximumf>, %28, %cst_17 [1] : vector<8x8x1xf32> to vector<8x1xf32>
    %30 = vector.shape_cast %29 : vector<8x1xf32> to vector<8x1x1xf32>
    %31 = vector.broadcast %30 : vector<8x1x1xf32> to vector<8x8x1xf32>
    %32 = arith.subf %28, %31 : vector<8x8x1xf32>
    %33 = math.exp %32 : vector<8x8x1xf32>
    %cst_18 = arith.constant dense<0.000000e+00> : vector<8x1xf32>
    %34 = vector.multi_reduction <add>, %33, %cst_18 [1] : vector<8x8x1xf32> to vector<8x1xf32>
    %35 = vector.shape_cast %34 : vector<8x1xf32> to vector<8x1x1xf32>
    %36 = vector.broadcast %35 : vector<8x1x1xf32> to vector<8x8x1xf32>
    %37 = arith.divf %33, %36 : vector<8x8x1xf32>
    %38 = vector.broadcast %37 : vector<8x8x1xf32> to vector<8x8x32xf32>
    %39 = arith.mulf %38, %16 : vector<8x8x32xf32>
    %cst_19 = arith.constant dense<0.000000e+00> : vector<8x32xf32>
    %40 = vector.multi_reduction <add>, %39, %cst_19 [1] : vector<8x8x32xf32> to vector<8x32xf32>
    %41 = vector.broadcast %3 : vector<1x32xf32> to vector<8x32xf32>
    %42 = arith.addf %40, %41 : vector<8x32xf32>
    %cst_20 = arith.constant dense<0.000000e+00> : vector<8xf32>
    %43 = vector.multi_reduction <add>, %42, %cst_20 [1] : vector<8x32xf32> to vector<8xf32>
    %44 = vector.shape_cast %43 : vector<8xf32> to vector<8x1xf32>
    %cst_21 = arith.constant 3.200000e+01 : f32
    %45 = vector.broadcast %cst_21 : f32 to vector<8x1xf32>
    %46 = arith.divf %44, %45 : vector<8x1xf32>
    %47 = vector.broadcast %46 : vector<8x1xf32> to vector<8x32xf32>
    %48 = arith.subf %42, %47 : vector<8x32xf32>
    %49 = arith.mulf %48, %48 : vector<8x32xf32>
    %cst_22 = arith.constant dense<0.000000e+00> : vector<8xf32>
    %50 = vector.multi_reduction <add>, %49, %cst_22 [1] : vector<8x32xf32> to vector<8xf32>
    %51 = vector.shape_cast %50 : vector<8xf32> to vector<8x1xf32>
    %cst_23 = arith.constant 3.100000e+01 : f32
    %52 = vector.broadcast %cst_23 : f32 to vector<8x1xf32>
    %53 = arith.divf %51, %52 : vector<8x1xf32>
    %54 = math.sqrt %53 : vector<8x1xf32>
    %55 = vector.broadcast %4 : vector<1x32xf32> to vector<8x32xf32>
    %56 = arith.mulf %55, %48 : vector<8x32xf32>
    %cst_24 = arith.constant 9.99999997E-7 : f32
    %57 = vector.broadcast %cst_24 : f32 to vector<8x1xf32>
    %58 = arith.addf %54, %57 : vector<8x1xf32>
    %59 = vector.broadcast %58 : vector<8x1xf32> to vector<8x32xf32>
    %60 = arith.divf %56, %59 : vector<8x32xf32>
    %61 = vector.broadcast %5 : vector<1x32xf32> to vector<8x32xf32>
    %62 = arith.addf %60, %61 : vector<8x32xf32>
    %c0_25 = arith.constant 0 : index
    %c0_26 = arith.constant 0 : index
    %63 = vector.load %arg5[%c0_25, %c0_26] : memref<8x32xf32, #tpu.memory_space<vmem>>, vector<8x32xf32>
    tpu.vector_store %arg5[%c0_25, %c0_26], %62 {strides = array<i32>} : memref<8x32xf32, #tpu.memory_space<vmem>>, vector<8x32xf32>,
    return
  }
  func.func @transform_0(%arg0: i32) -> (i32, i32, i32) {
    %c0_i32 = arith.constant 0 : i32
    %c0_i32_0 = arith.constant 0 : i32
    %c0_i32_1 = arith.constant 0 : i32
    return %arg0, %c0_i32, %c0_i32_0 : i32, i32, i32
  }
  func.func @transform_1(%arg0: i32) -> (i32, i32, i32) {
    %c0_i32 = arith.constant 0 : i32
    %c0_i32_0 = arith.constant 0 : i32
    %c0_i32_1 = arith.constant 0 : i32
    return %arg0, %c0_i32, %c0_i32_0 : i32, i32, i32
  }
  func.func @transform_2(%arg0: i32) -> (i32, i32) {
    %c0_i32 = arith.constant 0 : i32
    %c0_i32_0 = arith.constant 0 : i32
    %c0_i32_1 = arith.constant 0 : i32
    return %c0_i32, %c0_i32_0 : i32, i32
  }
  func.func @transform_3(%arg0: i32) -> (i32, i32) {
    %c0_i32 = arith.constant 0 : i32
    %c0_i32_0 = arith.constant 0 : i32
    %c0_i32_1 = arith.constant 0 : i32
    return %c0_i32, %c0_i32_0 : i32, i32
  }
  func.func @transform_4(%arg0: i32) -> (i32, i32) {
    %c0_i32 = arith.constant 0 : i32
    %c0_i32_0 = arith.constant 0 : i32
    return %arg0, %c0_i32 : i32, i32
  }
}

</mosaic_0001>

<llo_original>
// kernel: attflat.1
$region0: #{attflat.1}
  #allocation0 [shape = 'u32[]', space=smem, size = 0x4, offset = 0x4, fixed_abs, tag = 'smem constant byte address 0x4 - core index']
  #allocation1 [shape = 'u32[144,128]{1,0:T(1,128)}', space=vmem, size = 0x12000, scoped, tag = 'internal scratch']
  %s0 = inlined_call_operand.vmem [shape: f32[16,8,32], index: 0, kind: input, shape index: {}]
  %s1 = inlined_call_operand.vmem [shape: s32[16,8,1], index: 1, kind: input, shape index: {}]
  %s2 = inlined_call_operand.hbm [shape: f32[32,64], index: 2, kind: input, shape index: {}]
  %s3 = inlined_call_operand.vmem [shape: f32[6,32], index: 3, kind: input, shape index: {}]
  %s4 = inlined_call_operand.hbm [shape: f32[16,32], index: 4, kind: output, shape index: {}]
  %s5 = sld [smem:[#allocation0]]
  $region53: #{attflat.1} parent=0
    _
  %s7 = ssub.s32 1, %s5
  %s8 = scalar_select 0, %s7, %s5
  $region1: #{attflat.1} parent=0
    #allocation2 [shape = 'u8[16384]{0}', space=vmem, size = 0x4000, scoped, tag = 'input window, operand 2, single buffered']
    #allocation3 [shape = 's32[2]{0}', space=sflag, size = 0x8, scoped, tag = 'scoped memory for attflat.1']
    #allocation4 [shape = 's32[2]{0}', space=sflag, size = 0x8, scoped, tag = 'scoped memory for attflat.1']
    #allocation5 [shape = 'u8[8192]{0}', space=vmem, size = 0x2000, scoped, tag = 'output window, operand 0']
    %9 = vsyncpa [#allocation3], 0
    %10 = vsyncpa [#allocation4], 0
    %s11 = scalar_lea.sflag [#allocation4], 1
    %12 = vsyncpa %s11, 0
    loop: start=0, step=1, limit=4
    $region2: #{attflat.1} parent=1 // loop_pre_header
      _
    $region3: #{attflat.1} parent=1 // loop_header
      %s14 = sphi 0, %s18
      %p15 = scmp.ge.s32.totalorder %s14, 4
      %s24 = sphi 0, %s26
      %s27 = sphi 0, %s24
      %s28 = sphi 0, %s27
      %s44 = sphi 0, %s28
      %s50 = sphi 0, %s52
      %s53 = sphi 0, %s50
      %s54 = sphi 0, %s53
      %s70 = sphi 0, %s54
      %s74 = sphi 0, %s74
      %s76 = sphi 0, %s74
      %s77 = sphi 0, %s76
      %s91 = sphi 0, %s77
      %s95 = sphi 0, %s95
      %s97 = sphi 0, %s95
      %s98 = sphi 0, %s97
      %s112 = sphi 0, %s98
      %s118 = sphi 0, %s120
      %s121 = sphi 0, %s118
      %s122 = sphi 0, %s121
      %s138 = sphi 0, %s122
    $region4: #{attflat.1} parent=1 // loop_header_branch
      %17 = sbr.rel (%p15) target = $region8
    $region5: #{attflat.1} parent=1 // loop_body
      %s19 = ssub.s32 %s14, 1
      %s20 = ssub.s32 %s14, 2
      %s21 = sadd.s32 %s14, 1
      %s22 = ssub.s32 %s14, %s21
      %p23 = scmp.eq.s32.totalorder %s22, 0
      %s25 = sadd.s32 %s24, 1
      %s26 = scalar_select %p23, %s24, %s25
      %p29 = pneg %p23
      %p30 = scmp.eq.s32.totalorder %s14, 1
      %p31 = por %p29, %p30
      %p32 = scmp.ne.s32.totalorder %s24, %s27
      %p33 = scmp.eq.s32.totalorder %s14, 0
      %p34 = por %p32, %p33
      %p35 = scmp.ne.s32.totalorder %s24, %s27
      %p36 = scmp.eq.s32.totalorder %s19, 1
      %p37 = por %p35, %p36
      %p38 = scmp.ne.s32.totalorder %s27, %s28
      %p39 = scmp.eq.s32.totalorder %s19, 0
      %p40 = por %p38, %p39
      %p41 = scmp.ne.s32.totalorder %s27, %s28
      %p42 = scmp.eq.s32.totalorder %s20, 1
      %p43 = por %p41, %p42
      %p45 = scmp.ne.s32.totalorder %s28, %s44
      %p46 = scmp.eq.s32.totalorder %s20, 0
      %p47 = por %p45, %p46
      %s48 = ssub.s32 %s14, %s21
      %p49 = scmp.eq.s32.totalorder %s48, 0
      %s51 = sadd.s32 %s50, 1
      %s52 = scalar_select %p49, %s50, %s51
      %p55 = pneg %p49
      %p56 = scmp.eq.s32.totalorder %s14, 1
      %p57 = por %p55, %p56
      %p58 = scmp.ne.s32.totalorder %s50, %s53
      %p59 = scmp.eq.s32.totalorder %s14, 0
      %p60 = por %p58, %p59
      %p61 = scmp.ne.s32.totalorder %s50, %s53
      %p62 = scmp.eq.s32.totalorder %s19, 1
      %p63 = por %p61, %p62
      %p64 = scmp.ne.s32.totalorder %s53, %s54
      %p65 = scmp.eq.s32.totalorder %s19, 0
      %p66 = por %p64, %p65
      %p67 = scmp.ne.s32.totalorder %s53, %s54
      %p68 = scmp.eq.s32.totalorder %s20, 1
      %p69 = por %p67, %p68
      %p71 = scmp.ne.s32.totalorder %s54, %s70
      %p72 = scmp.eq.s32.totalorder %s20, 0
      %p73 = por %p71, %p72
      %s75 = sadd.s32 %s74, 1
      %p78 = scmp.eq.s32.totalorder %s14, 1
      %p79 = scmp.ne.s32.totalorder %s74, %s76
      %p80 = scmp.eq.s32.totalorder %s14, 0
      %p81 = por %p79, %p80
      %p82 = scmp.ne.s32.totalorder %s74, %s76
      %p83 = scmp.eq.s32.totalorder %s19, 1
      %p84 = por %p82, %p83
      %p85 = scmp.ne.s32.totalorder %s76, %s77
      %p86 = scmp.eq.s32.totalorder %s19, 0
      %p87 = por %p85, %p86
      %p88 = scmp.ne.s32.totalorder %s76, %s77
      %p89 = scmp.eq.s32.totalorder %s20, 1
      %p90 = por %p88, %p89
      %p92 = scmp.ne.s32.totalorder %s77, %s91
      %p93 = scmp.eq.s32.totalorder %s20, 0
      %p94 = por %p92, %p93
      %s96 = sadd.s32 %s95, 1
      %p99 = scmp.eq.s32.totalorder %s14, 1
      %p100 = scmp.ne.s32.totalorder %s95, %s97
      %p101 = scmp.eq.s32.totalorder %s14, 0
      %p102 = por %p100, %p101
      %p103 = scmp.ne.s32.totalorder %s95, %s97
      %p104 = scmp.eq.s32.totalorder %s19, 1
      %p105 = por %p103, %p104
      %p106 = scmp.ne.s32.totalorder %s97, %s98
      %p107 = scmp.eq.s32.totalorder %s19, 0
      %p108 = por %p106, %p107
      %p109 = scmp.ne.s32.totalorder %s97, %s98
      %p110 = scmp.eq.s32.totalorder %s20, 1
      %p111 = por %p109, %p110
      %p113 = scmp.ne.s32.totalorder %s98, %s112
      %p114 = scmp.eq.s32.totalorder %s20, 0
      %p115 = por %p113, %p114
      %s116 = ssub.s32 %s14, %s21
      %p117 = scmp.eq.s32.totalorder %s116, 0
      %s119 = sadd.s32 %s118, 1
      %s120 = scalar_select %p117, %s118, %s119
      %p123 = pneg %p117
      %p124 = scmp.eq.s32.totalorder %s14, 1
      %p125 = por %p123, %p124
      %p126 = scmp.ne.s32.totalorder %s118, %s121
      %p127 = scmp.eq.s32.totalorder %s14, 0
      %p128 = por %p126, %p127
      %p129 = scmp.ne.s32.totalorder %s118, %s121
      %p130 = scmp.eq.s32.totalorder %s19, 1
      %p131 = por %p129, %p130
      %p132 = scmp.ne.s32.totalorder %s121, %s122
      %p133 = scmp.eq.s32.totalorder %s19, 0
      %p134 = por %p132, %p133
      %p135 = scmp.ne.s32.totalorder %s121, %s122
      %p136 = scmp.eq.s32.totalorder %s20, 1
      %p137 = por %p135, %p136
      %p139 = scmp.ne.s32.totalorder %s122, %s138
      %p140 = scmp.eq.s32.totalorder %s20, 0
      %p141 = por %p139, %p140
      %p142 = scmp.le.s32.totalorder 1, %s14
      %p143 = scmp.lt.s32.totalorder %s14, 3
      %p144 = pnand %p142, %p143
      %p145 = pneg %p144
      // Predicated region
      $region9: #{attflat.1} parent=5 // pred_check
        _
      $region10: #{attflat.1} parent=5 // pred_check_branch
        %147 = sbr.rel (%p144) target = $region12
      $region11: #{attflat.1} parent=5 // pred_region
        %s148 = ssub.s32 %s14, 1
        // Predicated region
        $region13: #{attflat.1} parent=11 // pred_check
          %p149 = pneg %p87
        $region14: #{attflat.1} parent=11 // pred_check_branch
          %151 = sbr.rel (%p149) target = $region16
        $region15: #{attflat.1} parent=11 // pred_region
          %s153 = ssub.s32 512, 512
          %154 = vsyncadd [#allocation3], %s153
          %s155 = sshll.u32 [#allocation2], 4
          %s156 = int_to_ptr.vmem [resolvable:$true] %s155
          %161 = dma.hbm_to_vmem [thread:$0]  %s2, 512, %s156, [#allocation3], 128, 128, 8
        $region16: #{attflat.1} parent=11 // pred_fallthru
          _
        // Predicated region
        $region17: #{attflat.1} parent=11 // pred_check
          %p162 = pneg %p108
        $region18: #{attflat.1} parent=11 // pred_check_branch
          %164 = sbr.rel (%p162) target = $region20
        $region19: #{attflat.1} parent=11 // pred_region
          _
        $region20: #{attflat.1} parent=11 // pred_fallthru
          _
      $region12: #{attflat.1} parent=5 // pred_fallthru
        _
      %p165 = scmp.lt.s32.totalorder %s14, 2
      // Predicated region
      $region21: #{attflat.1} parent=5 // pred_check
        %p166 = pneg %p165
      $region22: #{attflat.1} parent=5 // pred_check_branch
        %168 = sbr.rel (%p166) target = $region24
      $region23: #{attflat.1} parent=5 // pred_region
        // Predicated region
        $region25: #{attflat.1} parent=23 // pred_check
          %p169 = pneg %p34
        $region26: #{attflat.1} parent=23 // pred_check_branch
          %171 = sbr.rel (%p169) target = $region28
        $region27: #{attflat.1} parent=23 // pred_region
          %s172 = smul.u32 8, %s14
          %p173 = scmp.lt.s32.totalorder %s172, 15
          %s174 = scalar_select %p173, %s172, 15
          %s175 = smul.addr %s174, 8
          %s176 = scalar_lea.vmem %s0, %s175
          %s177 = smul.u32 8, %s14
        $region28: #{attflat.1} parent=23 // pred_fallthru
          _
        // Predicated region
        $region29: #{attflat.1} parent=23 // pred_check
          %p178 = pneg %p60
        $region30: #{attflat.1} parent=23 // pred_check_branch
          %180 = sbr.rel (%p178) target = $region32
        $region31: #{attflat.1} parent=23 // pred_region
          %s181 = smul.u32 8, %s14
          %p182 = scmp.lt.s32.totalorder %s181, 15
          %s183 = scalar_select %p182, %s181, 15
          %s184 = smul.addr %s183, 8
          %s185 = scalar_lea.vmem %s1, %s184
          %s186 = smul.u32 8, %s14
        $region32: #{attflat.1} parent=23 // pred_fallthru
          _
      $region24: #{attflat.1} parent=5 // pred_fallthru
        _
      %p187 = scmp.le.s32.totalorder 1, %s14
      %p188 = scmp.lt.s32.totalorder %s14, 3
      %p189 = pnand %p187, %p188
      %p190 = pneg %p189
      // Predicated region
      $region33: #{attflat.1} parent=5 // pred_check
        _
      $region34: #{attflat.1} parent=5 // pred_check_branch
        %192 = sbr.rel (%p189) target = $region36
      $region35: #{attflat.1} parent=5 // pred_region
        %s193 = ssub.s32 %s14, 1
        // Predicated region
        $region37: #{attflat.1} parent=35 // pred_check
          %p194 = pneg %p87
        $region38: #{attflat.1} parent=35 // pred_check_branch
          %196 = sbr.rel (%p194) target = $region40
        $region39: #{attflat.1} parent=35 // pred_region
          %197 = dma.done [#allocation3], 512
        $region40: #{attflat.1} parent=35 // pred_fallthru
          _
        %s198 = smul.u32 8, %s19
        %p199 = scmp.lt.s32.totalorder %s198, 15
        %s200 = scalar_select %p199, %s198, 15
        %s201 = smul.addr %s200, 8
        %s202 = scalar_lea.vmem %s0, %s201
        %p203 = pneg %p40
        %p204 = pneg %p37
        %s205 = smul.u32 8, %s19
        %p206 = scmp.lt.s32.totalorder %s205, 15
        %s207 = scalar_select %p206, %s205, 15
        %s208 = smul.addr %s207, 8
        %s209 = scalar_lea.vmem %s1, %s208
        %p210 = pneg %p66
        %p211 = pneg %p63
        %p212 = pneg %p87
        %p213 = pneg %p84
        %p214 = pneg %p108
        %p215 = pneg %p105
        %p216 = pneg %p134
        %p217 = pneg %p131
        %s218 = sand.u32 %s121, 1
        %s219 = scalar_lea.sflag [#allocation4], %s218
        %s220 = sand.u32 %s121, 1
        %s221 = smul.addr %s220, 8
        %s222 = scalar_lea.vmem [#allocation5], %s221
        %s223 = smul.u32 8, %s19
        %p224 = scmp.lt.s32.totalorder %s223, 15
        %s225 = scalar_select %p224, %s223, 15
        %s226 = smul.addr %s225, 8
        %s227 = scalar_lea.vmem %s0, %s226
        %s228 = smul.u32 8, %s19
        %s229 = smul.u32 8, %s19
        %p230 = scmp.lt.s32.totalorder %s229, 15
        %s231 = scalar_select %p230, %s229, 15
        %s232 = smul.addr %s231, 8
        %s233 = scalar_lea.vmem %s1, %s232
        %s234 = smul.u32 8, %s19
        %v235 = vld [vmem:[%s227] sm:$0xff]
        %v236 = vld [vmem:[%s227 + $0x8] sm:$0xff]
        %v237 = vld [vmem:[%s227 + $0x10] sm:$0xff]
        %v238 = vld [vmem:[%s227 + $0x18] sm:$0xff]
        %v239 = vld [vmem:[%s227 + $0x20] sm:$0xff]
        %v240 = vld [vmem:[%s227 + $0x28] sm:$0xff]
        %v241 = vld [vmem:[%s227 + $0x30] sm:$0xff]
        %v242 = vld [vmem:[%s227 + $0x38] sm:$0xff]
        %v243 = vld [vmem:[%s3] sm:$0x1]
        %v244 = vld [vmem:[%s3 + $0x1] sm:$0x1]
        %v245 = vld [vmem:[%s3 + $0x2] sm:$0x1]
        %v246 = vld [vmem:[%s3 + $0x3] sm:$0x1]
        %v247 = vld [vmem:[%s3 + $0x4] sm:$0x1]
        %v248 = vld [vmem:[%s3 + $0x5] sm:$0x1]
        %v249 = vld [vmem:[#allocation2] sm:$0xff]
        %v250 = vld [vmem:[#allocation2 + $0x8] sm:$0xff]
        %v251 = vld [vmem:[#allocation2 + $0x10] sm:$0xff]
        %v252 = vld [vmem:[#allocation2 + $0x18] sm:$0xff]
        %vm253 = vcmask 261120
        %v255 = vsel %vm253, %v235, 0
        %v258 = vsel %vm253, %v236, 0
        %v261 = vsel %vm253, %v237, 0
        %v264 = vsel %vm253, %v238, 0
        %v267 = vsel %vm253, %v239, 0
        %v270 = vsel %vm253, %v240, 0
        %v273 = vsel %vm253, %v241, 0
        %v276 = vsel %vm253, %v242, 0
        %278 = vmatprep.subr.mxu0 0.0
        %279 = vmatpush1.msra.mxu0 %v249
        %280 = vmatprep.subr.mxu0 0.0
        %281 = vmatpush1.msra.mxu0 %v250
        %282 = vmatprep.subr.mxu0 0.0
        %283 = vmatpush1.msra.mxu0 %v251
        %284 = vmatprep.subr.mxu0 0.0
        %285 = vmatpush1.msra.mxu0 %v252
        %286 = vmatprep.subr.mxu0 0.0
        %287 = vmatpush1.msra.mxu0 0.0
        %288 = vmatprep.subr.mxu0 0.0
        %289 = vmatpush1.msra.mxu0 0.0
        %290 = vmatprep.subr.mxu0 0.0
        %291 = vmatpush1.msra.mxu0 0.0
        %292 = vmatprep.subr.mxu0 0.0
        %293 = vmatpush1.msra.mxu0 0.0
        %294 = vmatprep.subr.mxu0 0.0
        %295 = vmatpush1.msra.mxu0 0.0
        %296 = vmatprep.subr.mxu0 0.0
        %297 = vmatpush1.msra.mxu0 0.0
        %298 = vmatprep.subr.mxu0 0.0
        %299 = vmatpush1.msra.mxu0 0.0
        %300 = vmatprep.subr.mxu0 0.0
        %301 = vmatpush1.msra.mxu0 0.0
        %302 = vmatprep.subr.mxu0 0.0
        %303 = vmatpush1.msra.mxu0 0.0
        %304 = vmatprep.subr.mxu0 0.0
        %305 = vmatpush1.msra.mxu0 0.0
        %306 = vmatprep.subr.mxu0 0.0
        %307 = vmatpush1.msra.mxu0 0.0
        %308 = vmatprep.subr.mxu0 0.0
        %309 = vmatpush1.msra.mxu0 0.0
        %310 = vmatprep.subr.mxu0 0.0
        %311 = vmatpush1.msra.mxu0 0.0
        %312 = vmatprep.subr.mxu0 0.0
        %313 = vmatpush1.msra.mxu0 0.0
        %314 = vmatprep.subr.mxu0 0.0
        %315 = vmatpush1.msra.mxu0 0.0
        %316 = vmatprep.subr.mxu0 0.0
        %317 = vmatpush1.msra.mxu0 0.0
        %318 = vmatprep.subr.mxu0 0.0
        %319 = vmatpush1.msra.mxu0 0.0
        %320 = vmatprep.subr.mxu0 0.0
        %321 = vmatpush1.msra.mxu0 0.0
        %322 = vmatprep.subr.mxu0 0.0
        %323 = vmatpush1.msra.mxu0 0.0
        %324 = vmatprep.subr.mxu0 0.0
        %325 = vmatpush1.msra.mxu0 0.0
        %326 = vmatprep.subr.mxu0 0.0
        %327 = vmatpush1.msra.mxu0 0.0
        %328 = vmatprep.subr.mxu0 0.0
        %329 = vmatpush1.msra.mxu0 0.0
        %330 = vmatprep.subr.mxu0 0.0
        %331 = vmatpush1.msra.mxu0 0.0
        %332 = vmatprep.subr.mxu0 0.0
        %333 = vmatpush1.msra.mxu0 0.0
        %334 = vmatprep.subr.mxu0 0.0
        %335 = vmatpush1.msra.mxu0 0.0
        %336 = vmatprep.subr.mxu0 0.0
        %337 = vmatpush1.msra.mxu0 0.0
        %338 = vmatprep.subr.mxu0 0.0
        %339 = vmatpush1.msra.mxu0 0.0
        %340 = vmatprep.subr.mxu0 0.0
        %341 = vmatpush1.msra.mxu0 0.0
        %342 = vmatprep.mubr.f32.mxu0 0.0
        %343 = vmatmul.mubr.f32.gmra.mrb[0].mxu0 %v255
        %v344 = vpop.f32.mrb[0].mxu0
        %v345 = vadd.f32 0.0, %v344
        %v346 = vpop.f32.mrb[0].mxu0
        %347 = vmatprep.mubr.f32.mxu0 0.0
        %348 = vmatmul.mubr.f32.gmra.mrb[0].mxu0 %v258
        %v349 = vpop.f32.mrb[0].mxu0
        %v350 = vadd.f32 0.0, %v349
        %v351 = vpop.f32.mrb[0].mxu0
        %352 = vmatprep.mubr.f32.mxu0 0.0
        %353 = vmatmul.mubr.f32.gmra.mrb[0].mxu0 %v261
        %v354 = vpop.f32.mrb[0].mxu0
        %v355 = vadd.f32 0.0, %v354
        %v356 = vpop.f32.mrb[0].mxu0
        %357 = vmatprep.mubr.f32.mxu0 0.0
        %358 = vmatmul.mubr.f32.gmra.mrb[0].mxu0 %v264
        %v359 = vpop.f32.mrb[0].mxu0
        %v360 = vadd.f32 0.0, %v359
        %v361 = vpop.f32.mrb[0].mxu0
        %362 = vmatprep.mubr.f32.mxu0 0.0
        %363 = vmatmul.mubr.f32.gmra.mrb[0].mxu0 %v267
        %v364 = vpop.f32.mrb[0].mxu0
        %v365 = vadd.f32 0.0, %v364
        %v366 = vpop.f32.mrb[0].mxu0
        %367 = vmatprep.mubr.f32.mxu0 0.0
        %368 = vmatmul.mubr.f32.gmra.mrb[0].mxu0 %v270
        %v369 = vpop.f32.mrb[0].mxu0
        %v370 = vadd.f32 0.0, %v369
        %v371 = vpop.f32.mrb[0].mxu0
        %372 = vmatprep.mubr.f32.mxu0 0.0
        %373 = vmatmul.mubr.f32.gmra.mrb[0].mxu0 %v273
        %v374 = vpop.f32.mrb[0].mxu0
        %v375 = vadd.f32 0.0, %v374
        %v376 = vpop.f32.mrb[0].mxu0
        %377 = vmatprep.mubr.f32.mxu0 0.0
        %378 = vmatmul.mubr.f32.gmra.mrb[0].mxu0 %v276
        %v379 = vpop.f32.mrb[0].mxu0
        %v380 = vadd.f32 0.0, %v379
        %v381 = vpop.f32.mrb[0].mxu0
        %382 = vdwg.mxu0
        %v383 = vlaneseq
        %v384 = vshrl.u32 %v383, 7
        %v385 = vsub.s32 0, %v384
        %v386 = vrot.slane %v243, %v385
        %v387 = vadd.f32 %v345, %v386
        %v388 = vadd.f32 %v350, %v386
        %v389 = vadd.f32 %v355, %v386
        %v390 = vadd.f32 %v360, %v386
        %v391 = vadd.f32 %v365, %v386
        %v392 = vadd.f32 %v370, %v386
        %v393 = vadd.f32 %v375, %v386
        %v394 = vadd.f32 %v380, %v386
        %v395 = vmax.f32 %v387, 0.0
        %v396 = vmax.f32 %v388, 0.0
        %v397 = vmax.f32 %v389, 0.0
        %v398 = vmax.f32 %v390, 0.0
        %v399 = vmax.f32 %v391, 0.0
        %v400 = vmax.f32 %v392, 0.0
        %v401 = vmax.f32 %v393, 0.0
        %v402 = vmax.f32 %v394, 0.0
        %v403 = vlaneseq
        %v404 = vshrl.u32 %v403, 7
        %v405 = vsub.s32 0, %v404
        %v406 = vrot.slane %v247, %v405
        %v407 = vmul.f32 %v395, %v406
        %v408 = vmul.f32 %v396, %v406
        %v409 = vmul.f32 %v397, %v406
        %v410 = vmul.f32 %v398, %v406
        %v411 = vmul.f32 %v399, %v406
        %v412 = vmul.f32 %v400, %v406
        %v413 = vmul.f32 %v401, %v406
        %v414 = vmul.f32 %v402, %v406
        %v415 = vsel %vm253, %v407, 0.0
        %416 = vadd.xlane.f32.xlu0 %v415
        %v417 = vpop.xlane.xlu0 %416
        %v418 = vsel %vm253, %v408, 0.0
        %419 = vadd.xlane.f32.xlu0 %v418
        %v420 = vpop.xlane.xlu0 %419
        %v421 = vsel %vm253, %v409, 0.0
        %422 = vadd.xlane.f32.xlu0 %v421
        %v423 = vpop.xlane.xlu0 %422
        %v424 = vsel %vm253, %v410, 0.0
        %425 = vadd.xlane.f32.xlu0 %v424
        %v426 = vpop.xlane.xlu0 %425
        %v427 = vsel %vm253, %v411, 0.0
        %428 = vadd.xlane.f32.xlu0 %v427
        %v429 = vpop.xlane.xlu0 %428
        %v430 = vsel %vm253, %v412, 0.0
        %431 = vadd.xlane.f32.xlu0 %v430
        %v432 = vpop.xlane.xlu0 %431
        %v433 = vsel %vm253, %v413, 0.0
        %434 = vadd.xlane.f32.xlu0 %v433
        %v435 = vpop.xlane.xlu0 %434
        %v436 = vsel %vm253, %v414, 0.0
        %437 = vadd.xlane.f32.xlu0 %v436
        %v438 = vpop.xlane.xlu0 %437
        %v439 = vlaneseq
        %v440 = vshrl.u32 %v439, 7
        %v441 = vsub.s32 0, %v440
        %v442 = vrot.slane %v248, %v441
        %v443 = vadd.f32 %v417, %v442
        %v444 = vadd.f32 %v420, %v442
        %v445 = vadd.f32 %v423, %v442
        %v446 = vadd.f32 %v426, %v442
        %v447 = vadd.f32 %v429, %v442
        %v448 = vadd.f32 %v432, %v442
        %v449 = vadd.f32 %v435, %v442
        %v450 = vadd.f32 %v438, %v442
        %v451 = vld [vmem:[%s233] sm:$0xff]
        %v452 = vld [vmem:[%s233 + $0x8] sm:$0xff]
        %v453 = vld [vmem:[%s233 + $0x10] sm:$0xff]
        %v454 = vld [vmem:[%s233 + $0x18] sm:$0xff]
        %v455 = vld [vmem:[%s233 + $0x20] sm:$0xff]
        %v456 = vld [vmem:[%s233 + $0x28] sm:$0xff]
        %v457 = vld [vmem:[%s233 + $0x30] sm:$0xff]
        %v458 = vld [vmem:[%s233 + $0x38] sm:$0xff]
        %vm459 = vcmp.ne.s32.totalorder %v451, 0
        %vm460 = vcmp.ne.s32.totalorder %v452, 0
        %vm461 = vcmp.ne.s32.totalorder %v453, 0
        %vm462 = vcmp.ne.s32.totalorder %v454, 0
        %vm463 = vcmp.ne.s32.totalorder %v455, 0
        %vm464 = vcmp.ne.s32.totalorder %v456, 0
        %vm465 = vcmp.ne.s32.totalorder %v457, 0
        %vm466 = vcmp.ne.s32.totalorder %v458, 0
        %v467 = vsel %vm459, -1e+09, %v443
        %v468 = vsel %vm460, -1e+09, %v444
        %v469 = vsel %vm461, -1e+09, %v445
        %v470 = vsel %vm462, -1e+09, %v446
        %v471 = vsel %vm463, -1e+09, %v447
        %v472 = vsel %vm464, -1e+09, %v448
        %v473 = vsel %vm465, -1e+09, %v449
        %v474 = vsel %vm466, -1e+09, %v450
        %vm475 = vcmask 7168
        %v476 = vsel %vm475, %v467, -inf
        %v477 = vrot.slane %v476, 4
        %v478 = vmax.f32 %v476, %v477
        %v479 = vrot.slane %v478, 2
        %v480 = vmax.f32 %v478, %v479
        %v481 = vrot.slane %v480, 1
        %v482 = vmax.f32 %v480, %v481
        %v483 = vsel %vm475, %v468, -inf
        %v484 = vrot.slane %v483, 4
        %v485 = vmax.f32 %v483, %v484
        %v486 = vrot.slane %v485, 2
        %v487 = vmax.f32 %v485, %v486
        %v488 = vrot.slane %v487, 1
        %v489 = vmax.f32 %v487, %v488
        %v490 = vsel %vm475, %v469, -inf
        %v491 = vrot.slane %v490, 4
        %v492 = vmax.f32 %v490, %v491
        %v493 = vrot.slane %v492, 2
        %v494 = vmax.f32 %v492, %v493
        %v495 = vrot.slane %v494, 1
        %v496 = vmax.f32 %v494, %v495
        %v497 = vsel %vm475, %v470, -inf
        %v498 = vrot.slane %v497, 4
        %v499 = vmax.f32 %v497, %v498
        %v500 = vrot.slane %v499, 2
        %v501 = vmax.f32 %v499, %v500
        %v502 = vrot.slane %v501, 1
        %v503 = vmax.f32 %v501, %v502
        %v504 = vsel %vm475, %v471, -inf
        %v505 = vrot.slane %v504, 4
        %v506 = vmax.f32 %v504, %v505
        %v507 = vrot.slane %v506, 2
        %v508 = vmax.f32 %v506, %v507
        %v509 = vrot.slane %v508, 1
        %v510 = vmax.f32 %v508, %v509
        %v511 = vsel %vm475, %v472, -inf
        %v512 = vrot.slane %v511, 4
        %v513 = vmax.f32 %v511, %v512
        %v514 = vrot.slane %v513, 2
        %v515 = vmax.f32 %v513, %v514
        %v516 = vrot.slane %v515, 1
        %v517 = vmax.f32 %v515, %v516
        %v518 = vsel %vm475, %v473, -inf
        %v519 = vrot.slane %v518, 4
        %v520 = vmax.f32 %v518, %v519
        %v521 = vrot.slane %v520, 2
        %v522 = vmax.f32 %v520, %v521
        %v523 = vrot.slane %v522, 1
        %v524 = vmax.f32 %v522, %v523
        %v525 = vsel %vm475, %v474, -inf
        %v526 = vrot.slane %v525, 4
        %v527 = vmax.f32 %v525, %v526
        %v528 = vrot.slane %v527, 2
        %v529 = vmax.f32 %v527, %v528
        %v530 = vrot.slane %v529, 1
        %v531 = vmax.f32 %v529, %v530
        %v532 = vsub.f32 %v467, %v482
        %v533 = vsub.f32 %v468, %v489
        %v534 = vsub.f32 %v469, %v496
        %v535 = vsub.f32 %v470, %v503
        %v536 = vsub.f32 %v471, %v510
        %v537 = vsub.f32 %v472, %v517
        %v538 = vsub.f32 %v473, %v524
        %v539 = vsub.f32 %v474, %v531
        %v540 = vmul.f32 %v532, 1.442695
        %v541 = vpow.pop %v540
        %v542 = vmul.f32 %v533, 1.442695
        %v543 = vpow.pop %v542
        %v544 = vmul.f32 %v534, 1.442695
        %v545 = vpow.pop %v544
        %v546 = vmul.f32 %v535, 1.442695
        %v547 = vpow.pop %v546
        %v548 = vmul.f32 %v536, 1.442695
        %v549 = vpow.pop %v548
        %v550 = vmul.f32 %v537, 1.442695
        %v551 = vpow.pop %v550
        %v552 = vmul.f32 %v538, 1.442695
        %v553 = vpow.pop %v552
        %v554 = vmul.f32 %v539, 1.442695
        %v555 = vpow.pop %v554
        %v556 = vsel %vm475, %v541, 0.0
        %v557 = vrot.slane %v556, 4
        %v558 = vadd.f32 %v556, %v557
        %v559 = vrot.slane %v558, 2
        %v560 = vadd.f32 %v558, %v559
        %v561 = vrot.slane %v560, 1
        %v562 = vadd.f32 %v560, %v561
        %v563 = vsel %vm475, %v543, 0.0
        %v564 = vrot.slane %v563, 4
        %v565 = vadd.f32 %v563, %v564
        %v566 = vrot.slane %v565, 2
        %v567 = vadd.f32 %v565, %v566
        %v568 = vrot.slane %v567, 1
        %v569 = vadd.f32 %v567, %v568
        %v570 = vsel %vm475, %v545, 0.0
        %v571 = vrot.slane %v570, 4
        %v572 = vadd.f32 %v570, %v571
        %v573 = vrot.slane %v572, 2
        %v574 = vadd.f32 %v572, %v573
        %v575 = vrot.slane %v574, 1
        %v576 = vadd.f32 %v574, %v575
        %v577 = vsel %vm475, %v547, 0.0
        %v578 = vrot.slane %v577, 4
        %v579 = vadd.f32 %v577, %v578
        %v580 = vrot.slane %v579, 2
        %v581 = vadd.f32 %v579, %v580
        %v582 = vrot.slane %v581, 1
        %v583 = vadd.f32 %v581, %v582
        %v584 = vsel %vm475, %v549, 0.0
        %v585 = vrot.slane %v584, 4
        %v586 = vadd.f32 %v584, %v585
        %v587 = vrot.slane %v586, 2
        %v588 = vadd.f32 %v586, %v587
        %v589 = vrot.slane %v588, 1
        %v590 = vadd.f32 %v588, %v589
        %v591 = vsel %vm475, %v551, 0.0
        %v592 = vrot.slane %v591, 4
        %v593 = vadd.f32 %v591, %v592
        %v594 = vrot.slane %v593, 2
        %v595 = vadd.f32 %v593, %v594
        %v596 = vrot.slane %v595, 1
        %v597 = vadd.f32 %v595, %v596
        %v598 = vsel %vm475, %v553, 0.0
        %v599 = vrot.slane %v598, 4
        %v600 = vadd.f32 %v598, %v599
        %v601 = vrot.slane %v600, 2
        %v602 = vadd.f32 %v600, %v601
        %v603 = vrot.slane %v602, 1
        %v604 = vadd.f32 %v602, %v603
        %v605 = vsel %vm475, %v555, 0.0
        %v606 = vrot.slane %v605, 4
        %v607 = vadd.f32 %v605, %v606
        %v608 = vrot.slane %v607, 2
        %v609 = vadd.f32 %v607, %v608
        %v610 = vrot.slane %v609, 1
        %v611 = vadd.f32 %v609, %v610
        %v612 = vrcp.pop %v562
        %v613 = vmul.f32 %v541, %v612
        %v614 = vrcp.pop %v569
        %v615 = vmul.f32 %v543, %v614
        %v616 = vrcp.pop %v576
        %v617 = vmul.f32 %v545, %v616
        %v618 = vrcp.pop %v583
        %v619 = vmul.f32 %v547, %v618
        %v620 = vrcp.pop %v590
        %v621 = vmul.f32 %v549, %v620
        %v622 = vrcp.pop %v597
        %v623 = vmul.f32 %v551, %v622
        %v624 = vrcp.pop %v604
        %v625 = vmul.f32 %v553, %v624
        %v626 = vrcp.pop %v611
        %v627 = vmul.f32 %v555, %v626
        %629 = vset.pattern.permute.xlu0 0
        %630 = vperm.xlu0 %629, %v613
        %v631 = vpop.permute.xlu0 %630
        %634 = vset.pattern.permute.xlu0 0
        %635 = vperm.xlu0 %634, %v615
        %v636 = vpop.permute.xlu0 %635
        %639 = vset.pattern.permute.xlu0 0
        %640 = vperm.xlu0 %639, %v617
        %v641 = vpop.permute.xlu0 %640
        %644 = vset.pattern.permute.xlu0 0
        %645 = vperm.xlu0 %644, %v619
        %v646 = vpop.permute.xlu0 %645
        %649 = vset.pattern.permute.xlu0 0
        %650 = vperm.xlu0 %649, %v621
        %v651 = vpop.permute.xlu0 %650
        %654 = vset.pattern.permute.xlu0 0
        %655 = vperm.xlu0 %654, %v623
        %v656 = vpop.permute.xlu0 %655
        %659 = vset.pattern.permute.xlu0 0
        %660 = vperm.xlu0 %659, %v625
        %v661 = vpop.permute.xlu0 %660
        %664 = vset.pattern.permute.xlu0 0
        %665 = vperm.xlu0 %664, %v627
        %v666 = vpop.permute.xlu0 %665
        %v668 = vmul.f32 %v631, %v345
        %v669 = vmul.f32 %v636, %v350
        %v670 = vmul.f32 %v641, %v355
        %v671 = vmul.f32 %v646, %v360
        %v672 = vmul.f32 %v651, %v365
        %v673 = vmul.f32 %v656, %v370
        %v674 = vmul.f32 %v661, %v375
        %v675 = vmul.f32 %v666, %v380
        %vm676 = vcmask 523520
        %v677 = vsel %vm676, %v668, 0.0
        %v678 = vrot.slane %v677, 4
        %v679 = vadd.f32 %v677, %v678
        %v680 = vrot.slane %v679, 2
        %v681 = vadd.f32 %v679, %v680
        %v682 = vrot.slane %v681, 1
        %v683 = vadd.f32 %v681, %v682
        %v684 = vsel %vm676, %v669, 0.0
        %v685 = vrot.slane %v684, 4
        %v686 = vadd.f32 %v684, %v685
        %v687 = vrot.slane %v686, 2
        %v688 = vadd.f32 %v686, %v687
        %v689 = vrot.slane %v688, 1
        %v690 = vadd.f32 %v688, %v689
        %v691 = vsel %vm676, %v670, 0.0
        %v692 = vrot.slane %v691, 4
        %v693 = vadd.f32 %v691, %v692
        %v694 = vrot.slane %v693, 2
        %v695 = vadd.f32 %v693, %v694
        %v696 = vrot.slane %v695, 1
        %v697 = vadd.f32 %v695, %v696
        %v698 = vsel %vm676, %v671, 0.0
        %v699 = vrot.slane %v698, 4
        %v700 = vadd.f32 %v698, %v699
        %v701 = vrot.slane %v700, 2
        %v702 = vadd.f32 %v700, %v701
        %v703 = vrot.slane %v702, 1
        %v704 = vadd.f32 %v702, %v703
        %v705 = vsel %vm676, %v672, 0.0
        %v706 = vrot.slane %v705, 4
        %v707 = vadd.f32 %v705, %v706
        %v708 = vrot.slane %v707, 2
        %v709 = vadd.f32 %v707, %v708
        %v710 = vrot.slane %v709, 1
        %v711 = vadd.f32 %v709, %v710
        %v712 = vsel %vm676, %v673, 0.0
        %v713 = vrot.slane %v712, 4
        %v714 = vadd.f32 %v712, %v713
        %v715 = vrot.slane %v714, 2
        %v716 = vadd.f32 %v714, %v715
        %v717 = vrot.slane %v716, 1
        %v718 = vadd.f32 %v716, %v717
        %v719 = vsel %vm676, %v674, 0.0
        %v720 = vrot.slane %v719, 4
        %v721 = vadd.f32 %v719, %v720
        %v722 = vrot.slane %v721, 2
        %v723 = vadd.f32 %v721, %v722
        %v724 = vrot.slane %v723, 1
        %v725 = vadd.f32 %v723, %v724
        %v726 = vsel %vm676, %v675, 0.0
        %v727 = vrot.slane %v726, 4
        %v728 = vadd.f32 %v726, %v727
        %v729 = vrot.slane %v728, 2
        %v730 = vadd.f32 %v728, %v729
        %v731 = vrot.slane %v730, 1
        %v732 = vadd.f32 %v730, %v731
        %v733 = vlaneseq
        %v734 = vshrl.u32 %v733, 7
        %v735 = vsub.s32 0, %v734
        %v736 = vrot.slane %v244, %v735
        %738 = vrot.lane.b32.xlu0 %v736, 32
        %v739 = vpop.permute.xlu0 %738
        %v741 = vadd.f32 %v683, %v739
        %v742 = vadd.f32 %v690, %v739
        %v743 = vadd.f32 %v697, %v739
        %v744 = vadd.f32 %v704, %v739
        %v745 = vadd.f32 %v711, %v739
        %v746 = vadd.f32 %v718, %v739
        %v747 = vadd.f32 %v725, %v739
        %v748 = vadd.f32 %v732, %v739
        %v757 = vrot.slane %v742, 7
        %vm758 = vcmask 1041409
        %v759 = vsel %vm758, %v757, %v741
        %v760 = vrot.slane %v743, 6
        %vm761 = vcmask 1042434
        %v762 = vsel %vm761, %v760, %v759
        %v763 = vrot.slane %v744, 5
        %vm764 = vcmask 1043459
        %v765 = vsel %vm764, %v763, %v762
        %v766 = vrot.slane %v745, 4
        %vm767 = vcmask 1044484
        %v768 = vsel %vm767, %v766, %v765
        %v769 = vrot.slane %v746, 3
        %vm770 = vcmask 1045509
        %v771 = vsel %vm770, %v769, %v768
        %v772 = vrot.slane %v747, 2
        %vm773 = vcmask 1046534
        %v774 = vsel %vm773, %v772, %v771
        %v775 = vrot.slane %v748, 1
        %vm776 = vcmask 1047559
        %v777 = vsel %vm776, %v775, %v774
        %778 = vrot.lane.b32.xlu0 %v777, 96
        %v779 = vpop.permute.xlu0 %778
        %v781 = vsel %vm253, %v779, 0.0
        %782 = vadd.xlane.f32.xlu0 %v781
        %v783 = vpop.xlane.xlu0 %782
        %v784 = vrcp.pop 32.0
        %v785 = vmul.f32 %v783, %v784
        %v787 = vrot.slane %v785, 1
        %v788 = vrot.slane %v785, 2
        %v789 = vrot.slane %v785, 3
        %v790 = vrot.slane %v785, 4
        %v791 = vrot.slane %v785, 5
        %v792 = vrot.slane %v785, 6
        %v793 = vrot.slane %v785, 7
        %v802 = vsub.f32 %v741, %v785
        %v803 = vsub.f32 %v742, %v787
        %v804 = vsub.f32 %v743, %v788
        %v805 = vsub.f32 %v744, %v789
        %v806 = vsub.f32 %v745, %v790
        %v807 = vsub.f32 %v746, %v791
        %v808 = vsub.f32 %v747, %v792
        %v809 = vsub.f32 %v748, %v793
        %v810 = vmul.f32 %v802, %v802
        %v811 = vmul.f32 %v803, %v803
        %v812 = vmul.f32 %v804, %v804
        %v813 = vmul.f32 %v805, %v805
        %v814 = vmul.f32 %v806, %v806
        %v815 = vmul.f32 %v807, %v807
        %v816 = vmul.f32 %v808, %v808
        %v817 = vmul.f32 %v809, %v809
        %v826 = vrot.slane %v811, 7
        %v827 = vsel %vm758, %v826, %v810
        %v828 = vrot.slane %v812, 6
        %v829 = vsel %vm761, %v828, %v827
        %v830 = vrot.slane %v813, 5
        %v831 = vsel %vm764, %v830, %v829
        %v832 = vrot.slane %v814, 4
        %v833 = vsel %vm767, %v832, %v831
        %v834 = vrot.slane %v815, 3
        %v835 = vsel %vm770, %v834, %v833
        %v836 = vrot.slane %v816, 2
        %v837 = vsel %vm773, %v836, %v835
        %v838 = vrot.slane %v817, 1
        %v839 = vsel %vm776, %v838, %v837
        %840 = vrot.lane.b32.xlu0 %v839, 96
        %v841 = vpop.permute.xlu0 %840
        %v843 = vsel %vm253, %v841, 0.0
        %844 = vadd.xlane.f32.xlu0 %v843
        %v845 = vpop.xlane.xlu0 %844
        %v846 = vrcp.pop 31.0
        %v847 = vmul.f32 %v845, %v846
        %v848 = vrsqrt.pop %v847
        %v849 = vmul.f32 %v847, %v848
        %vm850 = vcmp.eq.f32.partialorder %v847, inf
        %v851 = vsel %vm850, %v847, %v849
        %vm852 = vcmp.eq.f32.partialorder %v847, 0.0
        %v853 = vand.u32 %v847, 2147483648
        %v854 = vsel %vm852, %v853, %v851
        %v855 = vlaneseq
        %v856 = vshrl.u32 %v855, 7
        %v857 = vsub.s32 0, %v856
        %v858 = vrot.slane %v245, %v857
        %v867 = vrot.slane %v803, 7
        %v868 = vsel %vm758, %v867, %v802
        %v869 = vrot.slane %v804, 6
        %v870 = vsel %vm761, %v869, %v868
        %v871 = vrot.slane %v805, 5
        %v872 = vsel %vm764, %v871, %v870
        %v873 = vrot.slane %v806, 4
        %v874 = vsel %vm767, %v873, %v872
        %v875 = vrot.slane %v807, 3
        %v876 = vsel %vm770, %v875, %v874
        %v877 = vrot.slane %v808, 2
        %v878 = vsel %vm773, %v877, %v876
        %v879 = vrot.slane %v809, 1
        %v880 = vsel %vm776, %v879, %v878
        %881 = vrot.lane.b32.xlu0 %v880, 96
        %v882 = vpop.permute.xlu0 %881
        %v884 = vmul.f32 %v858, %v882
        %v885 = vadd.f32 %v854, 1e-06
        %v886 = vrcp.pop %v885
        %v887 = vmul.f32 %v884, %v886
        %v888 = vlaneseq
        %v889 = vshrl.u32 %v888, 7
        %v890 = vsub.s32 0, %v889
        %v891 = vrot.slane %v246, %v890
        %v892 = vadd.f32 %v887, %v891
        %893 = vst.msk [vmem:[%s222] sm:$0xff] %vm253, %v892
        %s894 = sand.u32 %s121, 1
        %s895 = scalar_lea.sflag [#allocation4], %s894
        %s896 = sand.u32 %s121, 1
        %s897 = smul.addr %s896, 8
        %s898 = scalar_lea.vmem [#allocation5], %s897
        // Predicated region
        $region41: #{attflat.1} parent=35 // pred_check
          %p899 = pneg %p131
        $region42: #{attflat.1} parent=35 // pred_check_branch
          %901 = sbr.rel (%p899) target = $region44
        $region43: #{attflat.1} parent=35 // pred_region
          %s903 = ssub.s32 128, 128
          %904 = vsyncadd %s895, %s903
          %s905 = smul.addr %s19, 128
          %s906 = scalar_lea.hbm %s4, %s905
          %s908 = sshll.u32 %s898, 4
          %s909 = int_to_ptr.vmem [resolvable:$true] %s908
          %911 = dma.vmem_to_hbm [thread:$0]  %s909, 128, %s906, %s895
        $region44: #{attflat.1} parent=35 // pred_fallthru
          _
      $region36: #{attflat.1} parent=5 // pred_fallthru
        _
      %p912 = scmp.le.s32.totalorder 2, %s14
      // Predicated region
      $region45: #{attflat.1} parent=5 // pred_check
        %p913 = pneg %p912
      $region46: #{attflat.1} parent=5 // pred_check_branch
        %915 = sbr.rel (%p913) target = $region48
      $region47: #{attflat.1} parent=5 // pred_region
        %s916 = ssub.s32 %s14, 2
        // Predicated region
        $region49: #{attflat.1} parent=47 // pred_check
          %p917 = pneg %p137
        $region50: #{attflat.1} parent=47 // pred_check_branch
          %919 = sbr.rel (%p917) target = $region52
        $region51: #{attflat.1} parent=47 // pred_region
          %s920 = sand.u32 %s122, 1
          %s921 = scalar_lea.sflag [#allocation4], %s920
          %s922 = sand.u32 %s122, 1
          %s923 = smul.addr %s922, 8
          %s924 = scalar_lea.vmem [#allocation5], %s923
          %925 = dma.done %s921, 128
        $region52: #{attflat.1} parent=47 // pred_fallthru
          _
      $region48: #{attflat.1} parent=5 // pred_fallthru
        _
    $region6: #{attflat.1} parent=1 // loop_footer
      %s18 = sadd.s32 1, %s14
    $region7: #{attflat.1} parent=1 // loop_footer_branch
      %13 = sbr.rel target = $region3
    $region8: #{attflat.1} parent=1 // loop_exit
      _
    %926 = vsyncpa [#allocation3], 1
    %s927 = scalar_lea.sflag [#allocation3], 1
    %928 = vsyncpa %s927, 1
    %929 = vsyncpa [#allocation4], 1
    %s930 = scalar_lea.sflag [#allocation4], 1
    %931 = vsyncpa %s930, 1

</llo_original>
